<compile_context>
chip_gen: v7x
topology: tpu7x:2x2x1
jax: 0.10.0
libtpu: 0.0.40
codegen_flags: <defaults>
</compile_context>

<pallas_src>
import functools

import jax
import jax.numpy as jnp
from jax import lax
from jax.experimental import pallas as pl
from jax.experimental.pallas import tpu as pltpu

# Logit clamp value for padded / out-of-bounds elements:
#   exp(-|-1e4|) == 0  ->  softplus == 0, sigmoid == 0, BCE term == 0 exactly.
_NEG_CLAMP = -1.0e4


def _round_up(x, m):
    return (x + m - 1) // m * m


def _fold_lanes(v, tn):
    """(TB, TN) -> (TB, 128) partial sums using aligned 128-lane column slices
    and plain VPU adds (no XLU lane-reduction tree, no relayout)."""
    acc = v[:, 0:128]
    for j in range(1, tn // 128):
        acc = acc + v[:, j * 128:(j + 1) * 128]
    return acc


def _overlap_mask_loss_kernel(pred_ref, gt_ref, bce_ref, num_ref, den_ref,
                              *, N, TB, TN, need_clamp):
    # pred_ref: (TB, TN) logits tile (native dtype), gt_ref: (TB, TN) int8.
    # Outputs (resident across the N axis, f32, lane-dense):
    #   bce_ref: (TB, 128) per-row partial sums of stable BCE terms
    #   num_ref: (TB, 128) per-row partial sums of sigmoid(x) * y
    #   den_ref: (TB, 128) per-row partial sums of sigmoid(x) + y
    ni = pl.program_id(1)

    @pl.when(ni == 0)
    def _init():
        bce_ref[...] = jnp.zeros_like(bce_ref)
        num_ref[...] = jnp.zeros_like(num_ref)
        den_ref[...] = jnp.zeros_like(den_ref)

    x = pred_ref[...].astype(jnp.float32)        # (TB, TN)
    y = gt_ref[...].astype(jnp.float32)          # (TB, TN)

    if need_clamp:
        # Only emitted when N % TN != 0. Clamp (select, not multiply) so any
        # undefined out-of-bounds lane contents (possibly NaN) cannot leak
        # into the sums.
        col = ni * TN + lax.broadcasted_iota(jnp.int32, (TB, TN), 1)
        valid = col < N
        x = jnp.where(valid, x, _NEG_CLAMP)
        y = jnp.where(valid, y, 0.0)

    # Shared transcendental: e = exp(-|x|) feeds both the stable softplus of
    # BCE-with-logits and the exact sigmoid used by the dice loss.
    e = jnp.exp(-jnp.abs(x))
    softplus = jnp.log1p(e)                      # log(1 + exp(-|x|))
    inv = 1.0 / (1.0 + e)                        # exact VPU divide (EUP-friendly)
    s = jnp.where(x >= 0.0, inv, e * inv)        # sigmoid(x), exact

    # Stable BCE-with-logits: max(x, 0) - x*y + log(1 + exp(-|x|))
    bce_elem = jnp.maximum(x, 0.0) - x * y + softplus

    bce_ref[...] += _fold_lanes(bce_elem, TN)
    num_ref[...] += _fold_lanes(s * y, TN)
    den_ref[...] += _fold_lanes(s + y, TN)       # fused denominator sum(s + y)


def overlap_mask_loss(pred_instance_score, gt_instance_label, *,
                      tn_target=8192, max_tile_elems=512 * 1024,
                      pred_hbm_dtype=None):
    """pred_instance_score: (B, 1, N) logits (any float dtype)
       gt_instance_label  : (B, N) int/bool 0/1 labels
       returns (mask_bce_loss, mask_dice_loss) as float32 scalars."""
    pred = jnp.squeeze(pred_instance_score, axis=1)          # (B, N)
    if pred_hbm_dtype is not None:
        # Optional: bf16 at the HBM boundary (-40% pred traffic, ~1e-3 rel err).
        pred = pred.astype(pred_hbm_dtype)
    gt = gt_instance_label.astype(jnp.int8)                  # 1 B/elem in HBM
    B, N = pred.shape

    # ---- B (sublane) blocking: pad to a multiple of 32 so the int8 gt block
    # matches int8's native (32, 128) tile. Pad rows contribute exact zeros.
    Bp = _round_up(B, 32)
    if Bp != B:
        pred = jnp.pad(pred, ((0, Bp - B), (0, 0)), constant_values=_NEG_CLAMP)
        gt = jnp.pad(gt, ((0, Bp - B), (0, 0)))

    # ---- N (lane) tiling: multiple of 128, no padding; tail clamped in-kernel.
    TN = min(_round_up(N, 128), _round_up(tn_target, 128))
    n_steps = pl.cdiv(N, TN)
    need_clamp = (N % TN) != 0

    # ---- TB: multiple of 32 dividing Bp, per-step input kept near ~2.5 MiB,
    # and at least two row blocks when Bp >= 64 (v7x megacore sharding).
    max_tb = min(256, max(32, (max_tile_elems // TN) // 32 * 32))
    if Bp >= 64:
        max_tb = min(max_tb, max(32, (Bp // 2) // 32 * 32))
    TB = 32
    for t in range(32, max_tb + 1, 32):
        if Bp % t == 0:
            TB = t

    kernel = functools.partial(
        _overlap_mask_loss_kernel, N=N, TB=TB, TN=TN, need_clamp=need_clamp)

    out_shape = (
        jax.ShapeDtypeStruct((Bp, 128), jnp.float32),   # per-row BCE partials
        jax.ShapeDtypeStruct((Bp, 128), jnp.float32),   # per-row sum(s*y) partials
        jax.ShapeDtypeStruct((Bp, 128), jnp.float32),   # per-row sum(s+y) partials
    )

    bce128, num128, den128 = pl.pallas_call(
        kernel,
        out_shape=out_shape,
        grid_spec=pltpu.PrefetchScalarGridSpec(
            num_scalar_prefetch=0,
            grid=(Bp // TB, n_steps),
            in_specs=[
                pl.BlockSpec((TB, TN), lambda bi, ni: (bi, ni)),
                pl.BlockSpec((TB, TN), lambda bi, ni: (bi, ni)),
            ],
            out_specs=(
                pl.BlockSpec((TB, 128), lambda bi, ni: (bi, 0)),
                pl.BlockSpec((TB, 128), lambda bi, ni: (bi, 0)),
                pl.BlockSpec((TB, 128), lambda bi, ni: (bi, 0)),
            ),
        ),
        compiler_params=pltpu.CompilerParams(
            dimension_semantics=("parallel", "arbitrary"),
            vmem_limit_bytes=48 * 1024 * 1024,
        ),
    )(pred, gt)

    # Tiny O(B*128) finalization in the wrapper (single cross-lane reduce of the
    # lane-dense partials; keeps the kernel epilogue trivial).
    bce = jnp.sum(jnp.sum(bce128[:B], axis=-1)) / (B * N)
    num = jnp.sum(num128[:B], axis=-1)
    den = jnp.sum(den128[:B], axis=-1)
    dice = jnp.mean(1.0 - (2.0 * num + 1.0) / (den + 1.0))
    return bce.astype(jnp.float32), dice.astype(jnp.float32)


def _reference(pred_instance_score, gt_instance_label):
    # Pure-JAX reference for sanity checking.
    x = jnp.squeeze(pred_instance_score, axis=1).astype(jnp.float32)
    y = gt_instance_label.astype(jnp.float32)
    bce = jnp.mean(jnp.maximum(x, 0.0) - x * y + jnp.log1p(jnp.exp(-jnp.abs(x))))
    s = jax.nn.sigmoid(x)
    num = 2.0 * jnp.sum(s * y, axis=-1)
    den = jnp.sum(s, axis=-1) + jnp.sum(y, axis=-1)
    dice = jnp.mean(1.0 - (num + 1.0) / (den + 1.0))
    return bce, dice


if __name__ == "__main__":
    key = jax.random.PRNGKey(0)
    k1, k2, k3, k4 = jax.random.split(key, 4)

    # Case 1: small, aligned N (no in-kernel clamp path).
    B, N = 4, 256
    pred_instance_score = jax.random.normal(k1, (B, 1, N), dtype=jnp.float32)
    gt_instance_label = jax.random.bernoulli(k2, 0.3, (B, N)).astype(jnp.int32)

    bce, dice = overlap_mask_loss(pred_instance_score, gt_instance_label)
    jax.block_until_ready((bce, dice))
    ref_bce, ref_dice = _reference(pred_instance_score, gt_instance_label)
    assert jnp.allclose(bce, ref_bce, atol=1e-5, rtol=1e-5), (bce, ref_bce)
    assert jnp.allclose(dice, ref_dice, atol=1e-5, rtol=1e-5), (dice, ref_dice)

    # Case 2: ragged N (exercises the multi-step accumulation + tail clamp path).
    B2, N2 = 4, 200
    pred2 = jax.random.normal(k3, (B2, 1, N2), dtype=jnp.float32)
    gt2 = jax.random.bernoulli(k4, 0.3, (B2, N2)).astype(jnp.int32)

    bce2, dice2 = overlap_mask_loss(pred2, gt2, tn_target=128)
    jax.block_until_ready((bce2, dice2))
    ref_bce2, ref_dice2 = _reference(pred2, gt2)
    assert jnp.allclose(bce2, ref_bce2, atol=1e-5, rtol=1e-5), (bce2, ref_bce2)
    assert jnp.allclose(dice2, ref_dice2, atol=1e-5, rtol=1e-5), (dice2, ref_dice2)

    print("KERNEL_OK")
</pallas_src>

<mosaic_0001>
module attributes {stable_mosaic.version = 11 : i64} {
  func.func @_overlap_mask_loss_kernel(%arg0: i32, %arg1: i32, %arg2: memref<32x256xf32, #tpu.memory_space<vmem>>, %arg3: memref<32x256xi8, #tpu.memory_space<vmem>>, %arg4: memref<32x128xf32, #tpu.memory_space<vmem>>, %arg5: memref<32x128xf32, #tpu.memory_space<vmem>>, %arg6: memref<32x128xf32, #tpu.memory_space<vmem>>) attributes {dimension_semantics = [#tpu.dimension_semantics<parallel>, #tpu.dimension_semantics<arbitrary>], iteration_bounds = array<i64: 1, 1>, scalar_prefetch = 0 : i64, scratch_operands = 0 : i64, tpu.core_type = #tpu.core_type<tc>, window_params = [{transform_indices = @transform_0, window_bounds = array<i64: 32, 256>}, {transform_indices = @transform_1, window_bounds = array<i64: 32, 256>}, {transform_indices = @transform_2, window_bounds = array<i64: 32, 128>}, {transform_indices = @transform_3, window_bounds = array<i64: 32, 128>}, {transform_indices = @transform_4, window_bounds = array<i64: 32, 128>}]} {
    %c0_i32 = arith.constant 0 : i32
    %0 = arith.cmpi eq, %arg1, %c0_i32 : i32
    %1 = arith.extui %0 : i1 to i32
    %c0_i32_0 = arith.constant 0 : i32
    %2 = arith.cmpi ne, %1, %c0_i32_0 : i32
    scf.if %2 {
      %cst_20 = arith.constant 0.000000e+00 : f32
      %44 = vector.broadcast %cst_20 : f32 to vector<32x128xf32>
      %c0_21 = arith.constant 0 : index
      %c0_22 = arith.constant 0 : index
      %45 = vector.load %arg4[%c0_21, %c0_22] : memref<32x128xf32, #tpu.memory_space<vmem>>, vector<32x128xf32>
      tpu.vector_store %arg4[%c0_21, %c0_22], %44 {strides = array<i32>} : memref<32x128xf32, #tpu.memory_space<vmem>>, vector<32x128xf32>,
      %cst_23 = arith.constant 0.000000e+00 : f32
      %46 = vector.broadcast %cst_23 : f32 to vector<32x128xf32>
      %c0_24 = arith.constant 0 : index
      %c0_25 = arith.constant 0 : index
      %47 = vector.load %arg5[%c0_24, %c0_25] : memref<32x128xf32, #tpu.memory_space<vmem>>, vector<32x128xf32>
      tpu.vector_store %arg5[%c0_24, %c0_25], %46 {strides = array<i32>} : memref<32x128xf32, #tpu.memory_space<vmem>>, vector<32x128xf32>,
      %cst_26 = arith.constant 0.000000e+00 : f32
      %48 = vector.broadcast %cst_26 : f32 to vector<32x128xf32>
      %c0_27 = arith.constant 0 : index
      %c0_28 = arith.constant 0 : index
      %49 = vector.load %arg6[%c0_27, %c0_28] : memref<32x128xf32, #tpu.memory_space<vmem>>, vector<32x128xf32>
      tpu.vector_store %arg6[%c0_27, %c0_28], %48 {strides = array<i32>} : memref<32x128xf32, #tpu.memory_space<vmem>>, vector<32x128xf32>,
    } else {
    }
    %c0 = arith.constant 0 : index
    %c0_1 = arith.constant 0 : index
    %3 = vector.load %arg2[%c0, %c0_1] : memref<32x256xf32, #tpu.memory_space<vmem>>, vector<32x256xf32>
    %c0_2 = arith.constant 0 : index
    %c0_3 = arith.constant 0 : index
    %4 = vector.load %arg3[%c0_2, %c0_3] : memref<32x256xi8, #tpu.memory_space<vmem>>, vector<32x256xi8>
    %5 = arith.sitofp %4 : vector<32x256xi8> to vector<32x256xf32>
    %6 = math.absf %3 : vector<32x256xf32>
    %cst = arith.constant 0.000000e+00 : f32
    %7 = vector.broadcast %cst : f32 to vector<32x256xf32>
    %8 = arith.subf %7, %6 : vector<32x256xf32>
    %9 = math.exp %8 : vector<32x256xf32>
    %10 = math.log1p %9 : vector<32x256xf32>
    %cst_4 = arith.constant 1.000000e+00 : f32
    %11 = vector.broadcast %cst_4 : f32 to vector<32x256xf32>
    %12 = arith.addf %11, %9 : vector<32x256xf32>
    %cst_5 = arith.constant 1.000000e+00 : f32
    %13 = vector.broadcast %cst_5 : f32 to vector<32x256xf32>
    %14 = arith.divf %13, %12 : vector<32x256xf32>
    %cst_6 = arith.constant 0.000000e+00 : f32
    %15 = vector.broadcast %cst_6 : f32 to vector<32x256xf32>
    %16 = arith.cmpf oge, %3, %15 : vector<32x256xf32>
    %17 = arith.mulf %9, %14 : vector<32x256xf32>
    %18 = arith.select %16, %14, %17 : vector<32x256xi1>, vector<32x256xf32>
    %cst_7 = arith.constant 0.000000e+00 : f32
    %19 = vector.broadcast %cst_7 : f32 to vector<32x256xf32>
    %20 = arith.maximumf %3, %19 : vector<32x256xf32>
    %21 = arith.mulf %3, %5 : vector<32x256xf32>
    %22 = arith.subf %20, %21 : vector<32x256xf32>
    %23 = arith.addf %22, %10 : vector<32x256xf32>
    %c0_8 = arith.constant 0 : index
    %c0_9 = arith.constant 0 : index
    %24 = vector.load %arg4[%c0_8, %c0_9] : memref<32x128xf32, #tpu.memory_space<vmem>>, vector<32x128xf32>
    %25 = vector.extract_strided_slice %23 {offsets = [0, 0], sizes = [32, 128], strides = [1, 1]} : vector<32x256xf32> to vector<32x128xf32>
    %26 = vector.extract_strided_slice %23 {offsets = [0, 128], sizes = [32, 128], strides = [1, 1]} : vector<32x256xf32> to vector<32x128xf32>
    %27 = arith.addf %25, %26 : vector<32x128xf32>
    %28 = arith.addf %24, %27 : vector<32x128xf32>
    %c0_10 = arith.constant 0 : index
    %c0_11 = arith.constant 0 : index
    %29 = vector.load %arg4[%c0_10, %c0_11] : memref<32x128xf32, #tpu.memory_space<vmem>>, vector<32x128xf32>
    tpu.vector_store %arg4[%c0_10, %c0_11], %28 {strides = array<i32>} : memref<32x128xf32, #tpu.memory_space<vmem>>, vector<32x128xf32>,
    %c0_12 = arith.constant 0 : index
    %c0_13 = arith.constant 0 : index
    %30 = vector.load %arg5[%c0_12, %c0_13] : memref<32x128xf32, #tpu.memory_space<vmem>>, vector<32x128xf32>
    %31 = arith.mulf %18, %5 : vector<32x256xf32>
    %32 = vector.extract_strided_slice %31 {offsets = [0, 0], sizes = [32, 128], strides = [1, 1]} : vector<32x256xf32> to vector<32x128xf32>
    %33 = vector.extract_strided_slice %31 {offsets = [0, 128], sizes = [32, 128], strides = [1, 1]} : vector<32x256xf32> to vector<32x128xf32>
    %34 = arith.addf %32, %33 : vector<32x128xf32>
    %35 = arith.addf %30, %34 : vector<32x128xf32>
    %c0_14 = arith.constant 0 : index
    %c0_15 = arith.constant 0 : index
    %36 = vector.load %arg5[%c0_14, %c0_15] : memref<32x128xf32, #tpu.memory_space<vmem>>, vector<32x128xf32>
    tpu.vector_store %arg5[%c0_14, %c0_15], %35 {strides = array<i32>} : memref<32x128xf32, #tpu.memory_space<vmem>>, vector<32x128xf32>,
    %c0_16 = arith.constant 0 : index
    %c0_17 = arith.constant 0 : index
    %37 = vector.load %arg6[%c0_16, %c0_17] : memref<32x128xf32, #tpu.memory_space<vmem>>, vector<32x128xf32>
    %38 = arith.addf %18, %5 : vector<32x256xf32>
    %39 = vector.extract_strided_slice %38 {offsets = [0, 0], sizes = [32, 128], strides = [1, 1]} : vector<32x256xf32> to vector<32x128xf32>
    %40 = vector.extract_strided_slice %38 {offsets = [0, 128], sizes = [32, 128], strides = [1, 1]} : vector<32x256xf32> to vector<32x128xf32>
    %41 = arith.addf %39, %40 : vector<32x128xf32>
    %42 = arith.addf %37, %41 : vector<32x128xf32>
    %c0_18 = arith.constant 0 : index
    %c0_19 = arith.constant 0 : index
    %43 = vector.load %arg6[%c0_18, %c0_19] : memref<32x128xf32, #tpu.memory_space<vmem>>, vector<32x128xf32>
    tpu.vector_store %arg6[%c0_18, %c0_19], %42 {strides = array<i32>} : memref<32x128xf32, #tpu.memory_space<vmem>>, vector<32x128xf32>,
    return
  }
  func.func @transform_0(%arg0: i32, %arg1: i32) -> (i32, i32) {
    %c0_i32 = arith.constant 0 : i32
    return %arg0, %arg1 : i32, i32
  }
  func.func @transform_1(%arg0: i32, %arg1: i32) -> (i32, i32) {
    %c0_i32 = arith.constant 0 : i32
    return %arg0, %arg1 : i32, i32
  }
  func.func @transform_2(%arg0: i32, %arg1: i32) -> (i32, i32) {
    %c0_i32 = arith.constant 0 : i32
    %c0_i32_0 = arith.constant 0 : i32
    return %arg0, %c0_i32 : i32, i32
  }
  func.func @transform_3(%arg0: i32, %arg1: i32) -> (i32, i32) {
    %c0_i32 = arith.constant 0 : i32
    %c0_i32_0 = arith.constant 0 : i32
    return %arg0, %c0_i32 : i32, i32
  }
  func.func @transform_4(%arg0: i32, %arg1: i32) -> (i32, i32) {
    %c0_i32 = arith.constant 0 : i32
    %c0_i32_0 = arith.constant 0 : i32
    return %arg0, %c0_i32 : i32, i32
  }
}

</mosaic_0001>

<llo_original>
// kernel: tpu_custom_call.1
$region0: #{tpu_custom_call.1}
  #allocation0 [shape = 'u32[]', space=smem, size = 0x4, offset = 0x4, fixed_abs, tag = 'smem constant byte address 0x4 - core index']
  #allocation1 [shape = 'u32[144,128]{1,0:T(1,128)}', space=vmem, size = 0x12000, scoped, tag = 'internal scratch']
  %s0 = inlined_call_operand.hbm [shape: f32[32,256], index: 0, kind: input, shape index: {}]
  %s1 = inlined_call_operand.hbm [shape: s8[32,256], index: 1, kind: input, shape index: {}]
  %s2 = inlined_call_operand.hbm [shape: f32[32,128], index: 2, kind: output, shape index: {0}]
  %s3 = inlined_call_operand.hbm [shape: f32[32,128], index: 3, kind: output, shape index: {1}]
  %s4 = inlined_call_operand.hbm [shape: f32[32,128], index: 4, kind: output, shape index: {2}]
  %5 = xla_tuple %s2, %s3, %s4
  %s6 = sld [smem:[#allocation0]]
  $region46: #{tpu_custom_call.1} parent=0
    _
  %s8 = ssub.s32 1, %s6
  %s9 = scalar_select 0, %s8, %s6
  $region1: #{tpu_custom_call.1} parent=0
    #allocation2 [shape = 'u8[32768]{0}', space=vmem, size = 0x8000, scoped, tag = 'input window, operand 0, single buffered']
    #allocation3 [shape = 's32[1]{0}', space=sflag, size = 0x4, scoped, tag = 'scoped memory for tpu_custom_call.1']
    #allocation4 [shape = 's32[1]{0}', space=sflag, size = 0x4, scoped, tag = 'scoped memory for tpu_custom_call.1']
    #allocation5 [shape = 'u8[8192]{0}', space=vmem, size = 0x2000, scoped, tag = 'input window, operand 1, single buffered']
    #allocation6 [shape = 's32[1]{0}', space=sflag, size = 0x4, scoped, tag = 'scoped memory for tpu_custom_call.1']
    #allocation7 [shape = 'u8[16384]{0}', space=vmem, size = 0x4000, scoped, tag = 'output window, operand 0, single buffered']
    #allocation8 [shape = 'u8[16384]{0}', space=vmem, size = 0x4000, scoped, tag = 'output window, operand 1, single buffered']
    #allocation9 [shape = 's32[1]{0}', space=sflag, size = 0x4, scoped, tag = 'scoped memory for tpu_custom_call.1']
    #allocation10 [shape = 'u8[16384]{0}', space=vmem, size = 0x4000, scoped, tag = 'output window, operand 2, single buffered']
    %10 = vsyncpa [#allocation3], 0
    %11 = vsyncpa [#allocation6], 0
    %12 = vsyncpa [#allocation4], 0
    %13 = vsyncpa [#allocation9], 0
    // Predicated region
    $region2: #{tpu_custom_call.1} parent=1 // pred_check
      _
    $region3: #{tpu_custom_call.1} parent=1 // pred_check_branch
      %15 = sbr.rel (0) target = $region5
    $region4: #{tpu_custom_call.1} parent=1 // pred_region
      %s17 = ssub.s32 1024, 1024
      %18 = vsyncadd [#allocation3], %s17
      %s19 = sshll.u32 [#allocation2], 4
      %s20 = int_to_ptr.vmem [resolvable:$true] %s19
      %25 = dma.hbm_to_vmem [thread:$0]  %s0, 1024, %s20, [#allocation3], 256, 256, 16
    $region5: #{tpu_custom_call.1} parent=1 // pred_fallthru
      _
    // Predicated region
    $region6: #{tpu_custom_call.1} parent=1 // pred_check
      _
    $region7: #{tpu_custom_call.1} parent=1 // pred_check_branch
      %27 = sbr.rel (0) target = $region9
    $region8: #{tpu_custom_call.1} parent=1 // pred_region
      %s29 = ssub.s32 256, 256
      %30 = vsyncadd [#allocation6], %s29
      %s32 = sshll.u32 [#allocation5], 4
      %s33 = int_to_ptr.vmem [resolvable:$true] %s32
      %35 = dma.hbm_to_vmem [thread:$0]  %s1, 256, %s33, [#allocation6]
    $region9: #{tpu_custom_call.1} parent=1 // pred_fallthru
      _
    // Predicated region
    $region10: #{tpu_custom_call.1} parent=1 // pred_check
      _
    $region11: #{tpu_custom_call.1} parent=1 // pred_check_branch
      %37 = sbr.rel (0) target = $region13
    $region12: #{tpu_custom_call.1} parent=1 // pred_region
      %38 = dma.done [#allocation3], 1024
    $region13: #{tpu_custom_call.1} parent=1 // pred_fallthru
      _
    // Predicated region
    $region14: #{tpu_custom_call.1} parent=1 // pred_check
      _
    $region15: #{tpu_custom_call.1} parent=1 // pred_check_branch
      %40 = sbr.rel (0) target = $region17
    $region16: #{tpu_custom_call.1} parent=1 // pred_region
      %41 = dma.done [#allocation6], 256
    $region17: #{tpu_custom_call.1} parent=1 // pred_fallthru
      _
    %p42 = scmp.eq.s32.totalorder 0, 0
    // Predicated region
    $region18: #{tpu_custom_call.1} parent=1 // pred_check
      %p43 = pneg %p42
    $region19: #{tpu_custom_call.1} parent=1 // pred_check_branch
      %45 = sbr.rel (%p43) target = $region21
    $region20: #{tpu_custom_call.1} parent=1 // pred_region
      %46 = vst [vmem:[#allocation7] sm:$0xff] 0.0
      %47 = vst [vmem:[#allocation7 + $0x8] sm:$0xff] 0.0
      %48 = vst [vmem:[#allocation7 + $0x10] sm:$0xff] 0.0
      %49 = vst [vmem:[#allocation7 + $0x18] sm:$0xff] 0.0
      %50 = vst [vmem:[#allocation8] sm:$0xff] 0.0
      %51 = vst [vmem:[#allocation8 + $0x8] sm:$0xff] 0.0
      %52 = vst [vmem:[#allocation8 + $0x10] sm:$0xff] 0.0
      %53 = vst [vmem:[#allocation8 + $0x18] sm:$0xff] 0.0
      %54 = vst [vmem:[#allocation10] sm:$0xff] 0.0
      %55 = vst [vmem:[#allocation10 + $0x8] sm:$0xff] 0.0
      %56 = vst [vmem:[#allocation10 + $0x10] sm:$0xff] 0.0
      %57 = vst [vmem:[#allocation10 + $0x18] sm:$0xff] 0.0
    $region21: #{tpu_custom_call.1} parent=1 // pred_fallthru
      _
    %v58 = vld [vmem:[#allocation2] sm:$0xff]
    %v59 = vld [vmem:[#allocation2 + $0x8] sm:$0xff]
    %v60 = vld [vmem:[#allocation2 + $0x10] sm:$0xff]
    %v61 = vld [vmem:[#allocation2 + $0x18] sm:$0xff]
    %v62 = vld [vmem:[#allocation2 + $0x20] sm:$0xff]
    %v63 = vld [vmem:[#allocation2 + $0x28] sm:$0xff]
    %v64 = vld [vmem:[#allocation2 + $0x30] sm:$0xff]
    %v65 = vld [vmem:[#allocation2 + $0x38] sm:$0xff]
    %v66 = vld [vmem:[#allocation5] sm:$0xff]
    %v67 = vld [vmem:[#allocation5 + $0x8] sm:$0xff]
    %v68 = vunpack.c.0.s8 %v66
    %v69 = vunpack.c.0.s8 %v67
    %v70 = vunpack.c.1.s8 %v66
    %v71 = vunpack.c.1.s8 %v67
    %v72 = vunpack.c.2.s8 %v66
    %v73 = vunpack.c.2.s8 %v67
    %v74 = vunpack.c.3.s8 %v66
    %v75 = vunpack.c.3.s8 %v67
    %v76 = vcvt.s32.f32 %v68
    %v77 = vcvt.s32.f32 %v69
    %v78 = vcvt.s32.f32 %v70
    %v79 = vcvt.s32.f32 %v71
    %v80 = vcvt.s32.f32 %v72
    %v81 = vcvt.s32.f32 %v73
    %v82 = vcvt.s32.f32 %v74
    %v83 = vcvt.s32.f32 %v75
    %v84 = vand.u32 2147483647, %v58
    %v85 = vand.u32 2147483647, %v59
    %v86 = vand.u32 2147483647, %v60
    %v87 = vand.u32 2147483647, %v61
    %v88 = vand.u32 2147483647, %v62
    %v89 = vand.u32 2147483647, %v63
    %v90 = vand.u32 2147483647, %v64
    %v91 = vand.u32 2147483647, %v65
    %v92 = vsub.f32 0.0, %v84
    %v93 = vsub.f32 0.0, %v85
    %v94 = vsub.f32 0.0, %v86
    %v95 = vsub.f32 0.0, %v87
    %v96 = vsub.f32 0.0, %v88
    %v97 = vsub.f32 0.0, %v89
    %v98 = vsub.f32 0.0, %v90
    %v99 = vsub.f32 0.0, %v91
    %v100 = vmul.f32 %v92, 1.442695
    %v101 = vpow.pop %v100
    %v102 = vmul.f32 %v93, 1.442695
    %v103 = vpow.pop %v102
    %v104 = vmul.f32 %v94, 1.442695
    %v105 = vpow.pop %v104
    %v106 = vmul.f32 %v95, 1.442695
    %v107 = vpow.pop %v106
    %v108 = vmul.f32 %v96, 1.442695
    %v109 = vpow.pop %v108
    %v110 = vmul.f32 %v97, 1.442695
    %v111 = vpow.pop %v110
    %v112 = vmul.f32 %v98, 1.442695
    %v113 = vpow.pop %v112
    %v114 = vmul.f32 %v99, 1.442695
    %v115 = vpow.pop %v114
    %v116 = vadd.f32 %v101, 1.0
    %v117 = vlog2.pop %v116
    %v118 = vmul.f32 %v117, 0.6931472
    %v119 = vmul.f32 -0.5, %v101
    %v120 = vadd.f32 %v119, 1.0
    %v121 = vmul.f32 %v120, %v101
    %v122 = vand.u32 2147483647, %v101
    %vm123 = vcmp.lt.f32.partialorder %v122, 0.0004427343
    %v124 = vsel %vm123, %v121, %v118
    %v125 = vadd.f32 %v103, 1.0
    %v126 = vlog2.pop %v125
    %v127 = vmul.f32 %v126, 0.6931472
    %v128 = vmul.f32 -0.5, %v103
    %v129 = vadd.f32 %v128, 1.0
    %v130 = vmul.f32 %v129, %v103
    %v131 = vand.u32 2147483647, %v103
    %vm132 = vcmp.lt.f32.partialorder %v131, 0.0004427343
    %v133 = vsel %vm132, %v130, %v127
    %v134 = vadd.f32 %v105, 1.0
    %v135 = vlog2.pop %v134
    %v136 = vmul.f32 %v135, 0.6931472
    %v137 = vmul.f32 -0.5, %v105
    %v138 = vadd.f32 %v137, 1.0
    %v139 = vmul.f32 %v138, %v105
    %v140 = vand.u32 2147483647, %v105
    %vm141 = vcmp.lt.f32.partialorder %v140, 0.0004427343
    %v142 = vsel %vm141, %v139, %v136
    %v143 = vadd.f32 %v107, 1.0
    %v144 = vlog2.pop %v143
    %v145 = vmul.f32 %v144, 0.6931472
    %v146 = vmul.f32 -0.5, %v107
    %v147 = vadd.f32 %v146, 1.0
    %v148 = vmul.f32 %v147, %v107
    %v149 = vand.u32 2147483647, %v107
    %vm150 = vcmp.lt.f32.partialorder %v149, 0.0004427343
    %v151 = vsel %vm150, %v148, %v145
    %v152 = vadd.f32 %v109, 1.0
    %v153 = vlog2.pop %v152
    %v154 = vmul.f32 %v153, 0.6931472
    %v155 = vmul.f32 -0.5, %v109
    %v156 = vadd.f32 %v155, 1.0
    %v157 = vmul.f32 %v156, %v109
    %v158 = vand.u32 2147483647, %v109
    %vm159 = vcmp.lt.f32.partialorder %v158, 0.0004427343
    %v160 = vsel %vm159, %v157, %v154
    %v161 = vadd.f32 %v111, 1.0
    %v162 = vlog2.pop %v161
    %v163 = vmul.f32 %v162, 0.6931472
    %v164 = vmul.f32 -0.5, %v111
    %v165 = vadd.f32 %v164, 1.0
    %v166 = vmul.f32 %v165, %v111
    %v167 = vand.u32 2147483647, %v111
    %vm168 = vcmp.lt.f32.partialorder %v167, 0.0004427343
    %v169 = vsel %vm168, %v166, %v163
    %v170 = vadd.f32 %v113, 1.0
    %v171 = vlog2.pop %v170
    %v172 = vmul.f32 %v171, 0.6931472
    %v173 = vmul.f32 -0.5, %v113
    %v174 = vadd.f32 %v173, 1.0
    %v175 = vmul.f32 %v174, %v113
    %v176 = vand.u32 2147483647, %v113
    %vm177 = vcmp.lt.f32.partialorder %v176, 0.0004427343
    %v178 = vsel %vm177, %v175, %v172
    %v179 = vadd.f32 %v115, 1.0
    %v180 = vlog2.pop %v179
    %v181 = vmul.f32 %v180, 0.6931472
    %v182 = vmul.f32 -0.5, %v115
    %v183 = vadd.f32 %v182, 1.0
    %v184 = vmul.f32 %v183, %v115
    %v185 = vand.u32 2147483647, %v115
    %vm186 = vcmp.lt.f32.partialorder %v185, 0.0004427343
    %v187 = vsel %vm186, %v184, %v181
    %v188 = vadd.f32 %v101, 1.0
    %v189 = vadd.f32 %v103, 1.0
    %v190 = vadd.f32 %v105, 1.0
    %v191 = vadd.f32 %v107, 1.0
    %v192 = vadd.f32 %v109, 1.0
    %v193 = vadd.f32 %v111, 1.0
    %v194 = vadd.f32 %v113, 1.0
    %v195 = vadd.f32 %v115, 1.0
    %v196 = vrcp.pop %v188
    %v197 = vmul.f32 1.0, %v196
    %v198 = vrcp.pop %v189
    %v199 = vmul.f32 1.0, %v198
    %v200 = vrcp.pop %v190
    %v201 = vmul.f32 1.0, %v200
    %v202 = vrcp.pop %v191
    %v203 = vmul.f32 1.0, %v202
    %v204 = vrcp.pop %v192
    %v205 = vmul.f32 1.0, %v204
    %v206 = vrcp.pop %v193
    %v207 = vmul.f32 1.0, %v206
    %v208 = vrcp.pop %v194
    %v209 = vmul.f32 1.0, %v208
    %v210 = vrcp.pop %v195
    %v211 = vmul.f32 1.0, %v210
    %vm212 = vcmp.ge.f32.partialorder %v58, 0.0
    %vm213 = vcmp.ge.f32.partialorder %v59, 0.0
    %vm214 = vcmp.ge.f32.partialorder %v60, 0.0
    %vm215 = vcmp.ge.f32.partialorder %v61, 0.0
    %vm216 = vcmp.ge.f32.partialorder %v62, 0.0
    %vm217 = vcmp.ge.f32.partialorder %v63, 0.0
    %vm218 = vcmp.ge.f32.partialorder %v64, 0.0
    %vm219 = vcmp.ge.f32.partialorder %v65, 0.0
    %v220 = vmul.f32 %v101, %v197
    %v221 = vmul.f32 %v103, %v199
    %v222 = vmul.f32 %v105, %v201
    %v223 = vmul.f32 %v107, %v203
    %v224 = vmul.f32 %v109, %v205
    %v225 = vmul.f32 %v111, %v207
    %v226 = vmul.f32 %v113, %v209
    %v227 = vmul.f32 %v115, %v211
    %v228 = vsel %vm212, %v197, %v220
    %v229 = vsel %vm213, %v199, %v221
    %v230 = vsel %vm214, %v201, %v222
    %v231 = vsel %vm215, %v203, %v223
    %v232 = vsel %vm216, %v205, %v224
    %v233 = vsel %vm217, %v207, %v225
    %v234 = vsel %vm218, %v209, %v226
    %v235 = vsel %vm219, %v211, %v227
    %v236 = vmax.f32 %v58, 0.0
    %v237 = vmax.f32 %v59, 0.0
    %v238 = vmax.f32 %v60, 0.0
    %v239 = vmax.f32 %v61, 0.0
    %v240 = vmax.f32 %v62, 0.0
    %v241 = vmax.f32 %v63, 0.0
    %v242 = vmax.f32 %v64, 0.0
    %v243 = vmax.f32 %v65, 0.0
    %v244 = vmul.f32 %v58, %v76
    %v245 = vmul.f32 %v59, %v77
    %v246 = vmul.f32 %v60, %v78
    %v247 = vmul.f32 %v61, %v79
    %v248 = vmul.f32 %v62, %v80
    %v249 = vmul.f32 %v63, %v81
    %v250 = vmul.f32 %v64, %v82
    %v251 = vmul.f32 %v65, %v83
    %v252 = vsub.f32 %v236, %v244
    %v253 = vsub.f32 %v237, %v245
    %v254 = vsub.f32 %v238, %v246
    %v255 = vsub.f32 %v239, %v247
    %v256 = vsub.f32 %v240, %v248
    %v257 = vsub.f32 %v241, %v249
    %v258 = vsub.f32 %v242, %v250
    %v259 = vsub.f32 %v243, %v251
    %v260 = vadd.f32 %v252, %v124
    %v261 = vadd.f32 %v253, %v133
    %v262 = vadd.f32 %v254, %v142
    %v263 = vadd.f32 %v255, %v151
    %v264 = vadd.f32 %v256, %v160
    %v265 = vadd.f32 %v257, %v169
    %v266 = vadd.f32 %v258, %v178
    %v267 = vadd.f32 %v259, %v187
    %v268 = vld [vmem:[#allocation7] sm:$0xff]
    %v269 = vld [vmem:[#allocation7 + $0x8] sm:$0xff]
    %v270 = vld [vmem:[#allocation7 + $0x10] sm:$0xff]
    %v271 = vld [vmem:[#allocation7 + $0x18] sm:$0xff]
    %v272 = vadd.f32 %v260, %v261
    %v273 = vadd.f32 %v262, %v263
    %v274 = vadd.f32 %v264, %v265
    %v275 = vadd.f32 %v266, %v267
    %v276 = vadd.f32 %v268, %v272
    %v277 = vadd.f32 %v269, %v273
    %v278 = vadd.f32 %v270, %v274
    %v279 = vadd.f32 %v271, %v275
    %280 = vst [vmem:[#allocation7] sm:$0xff] %v276
    %281 = vst [vmem:[#allocation7 + $0x8] sm:$0xff] %v277
    %282 = vst [vmem:[#allocation7 + $0x10] sm:$0xff] %v278
    %283 = vst [vmem:[#allocation7 + $0x18] sm:$0xff] %v279
    %v284 = vld [vmem:[#allocation8] sm:$0xff]
    %v285 = vld [vmem:[#allocation8 + $0x8] sm:$0xff]
    %v286 = vld [vmem:[#allocation8 + $0x10] sm:$0xff]
    %v287 = vld [vmem:[#allocation8 + $0x18] sm:$0xff]
    %v288 = vmul.f32 %v228, %v76
    %v289 = vmul.f32 %v229, %v77
    %v290 = vmul.f32 %v230, %v78
    %v291 = vmul.f32 %v231, %v79
    %v292 = vmul.f32 %v232, %v80
    %v293 = vmul.f32 %v233, %v81
    %v294 = vmul.f32 %v234, %v82
    %v295 = vmul.f32 %v235, %v83
    %v296 = vadd.f32 %v288, %v289
    %v297 = vadd.f32 %v290, %v291
    %v298 = vadd.f32 %v292, %v293
    %v299 = vadd.f32 %v294, %v295
    %v300 = vadd.f32 %v284, %v296
    %v301 = vadd.f32 %v285, %v297
    %v302 = vadd.f32 %v286, %v298
    %v303 = vadd.f32 %v287, %v299
    %304 = vst [vmem:[#allocation8] sm:$0xff] %v300
    %305 = vst [vmem:[#allocation8 + $0x8] sm:$0xff] %v301
    %306 = vst [vmem:[#allocation8 + $0x10] sm:$0xff] %v302
    %307 = vst [vmem:[#allocation8 + $0x18] sm:$0xff] %v303
    %v308 = vld [vmem:[#allocation10] sm:$0xff]
    %v309 = vld [vmem:[#allocation10 + $0x8] sm:$0xff]
    %v310 = vld [vmem:[#allocation10 + $0x10] sm:$0xff]
    %v311 = vld [vmem:[#allocation10 + $0x18] sm:$0xff]
    %v312 = vadd.f32 %v228, %v76
    %v313 = vadd.f32 %v229, %v77
    %v314 = vadd.f32 %v230, %v78
    %v315 = vadd.f32 %v231, %v79
    %v316 = vadd.f32 %v232, %v80
    %v317 = vadd.f32 %v233, %v81
    %v318 = vadd.f32 %v234, %v82
    %v319 = vadd.f32 %v235, %v83
    %v320 = vadd.f32 %v312, %v313
    %v321 = vadd.f32 %v314, %v315
    %v322 = vadd.f32 %v316, %v317
    %v323 = vadd.f32 %v318, %v319
    %v324 = vadd.f32 %v308, %v320
    %v325 = vadd.f32 %v309, %v321
    %v326 = vadd.f32 %v310, %v322
    %v327 = vadd.f32 %v311, %v323
    %328 = vst [vmem:[#allocation10] sm:$0xff] %v324
    %329 = vst [vmem:[#allocation10 + $0x8] sm:$0xff] %v325
    %330 = vst [vmem:[#allocation10 + $0x10] sm:$0xff] %v326
    %331 = vst [vmem:[#allocation10 + $0x18] sm:$0xff] %v327
    // Predicated region
    $region22: #{tpu_custom_call.1} parent=1 // pred_check
      _
    $region23: #{tpu_custom_call.1} parent=1 // pred_check_branch
      %333 = sbr.rel (0) target = $region25
    $region24: #{tpu_custom_call.1} parent=1 // pred_region
      %s335 = ssub.s32 512, 512
      %336 = vsyncadd [#allocation4], %s335
      %s337 = sshll.u32 [#allocation7], 4
      %s338 = int_to_ptr.vmem [resolvable:$true] %s337
      %343 = dma.vmem_to_hbm [thread:$0]  %s338, 512, %s2, [#allocation4], 128, 128, 8
    $region25: #{tpu_custom_call.1} parent=1 // pred_fallthru
      _
    // Predicated region
    $region26: #{tpu_custom_call.1} parent=1 // pred_check
      _
    $region27: #{tpu_custom_call.1} parent=1 // pred_check_branch
      %345 = sbr.rel (0) target = $region29
    $region28: #{tpu_custom_call.1} parent=1 // pred_region
      %s347 = ssub.s32 512, 512
      %348 = vsyncadd [#allocation9], %s347
      %s349 = sshll.u32 [#allocation8], 4
      %s350 = int_to_ptr.vmem [resolvable:$true] %s349
      %355 = dma.vmem_to_hbm [thread:$0]  %s350, 512, %s3, [#allocation9], 128, 128, 8
    $region29: #{tpu_custom_call.1} parent=1 // pred_fallthru
      _
    // Predicated region
    $region30: #{tpu_custom_call.1} parent=1 // pred_check
      _
    $region31: #{tpu_custom_call.1} parent=1 // pred_check_branch
      %357 = sbr.rel (0) target = $region33
    $region32: #{tpu_custom_call.1} parent=1 // pred_region
      %s359 = ssub.s32 512, 512
      %360 = vsyncadd [#allocation9], %s359
      %s361 = sshll.u32 [#allocation10], 4
      %s362 = int_to_ptr.vmem [resolvable:$true] %s361
      %367 = dma.vmem_to_hbm [thread:$0]  %s362, 512, %s4, [#allocation9], 128, 128, 8
    $region33: #{tpu_custom_call.1} parent=1 // pred_fallthru
      _
    // Predicated region
    $region34: #{tpu_custom_call.1} parent=1 // pred_check
      _
    $region35: #{tpu_custom_call.1} parent=1 // pred_check_branch
      %369 = sbr.rel (0) target = $region37
    $region36: #{tpu_custom_call.1} parent=1 // pred_region
      %370 = dma.done [#allocation4], 512
    $region37: #{tpu_custom_call.1} parent=1 // pred_fallthru
      _
    // Predicated region
    $region38: #{tpu_custom_call.1} parent=1 // pred_check
      _
    $region39: #{tpu_custom_call.1} parent=1 // pred_check_branch
      %372 = sbr.rel (0) target = $region41
    $region40: #{tpu_custom_call.1} parent=1 // pred_region
      %373 = dma.done [#allocation9], 512
    $region41: #{tpu_custom_call.1} parent=1 // pred_fallthru
      _
    // Predicated region
    $region42: #{tpu_custom_call.1} parent=1 // pred_check
      _
    $region43: #{tpu_custom_call.1} parent=1 // pred_check_branch
      %375 = sbr.rel (0) target = $region45
    $region44: #{tpu_custom_call.1} parent=1 // pred_region
      %376 = dma.done [#allocation9], 512
    $region45: #{tpu_custom_call.1} parent=1 // pred_fallthru
      _
    %377 = vsyncpa [#allocation3], 1
    %378 = vsyncpa [#allocation6], 1
    %379 = vsyncpa [#allocation4], 1
    %380 = vsyncpa [#allocation9], 1

</llo_original>
